<compile_context>
chip_gen: v6e
topology: v6e:2x2x1
jax: 0.10.0
libtpu: 0.0.40
codegen_flags: <defaults>
</compile_context>

<pallas_src>
import functools

import jax
import jax.numpy as jnp
from jax import lax
from jax.experimental import pallas as pl
from jax.experimental.pallas import tpu as pltpu


def _round_up(x, m):
    return ((x + m - 1) // m) * m


def _mac_kernel_full(x_ref, o_ref):
    # x_ref: (row_tile, H*W) tile in VMEM; reduce the whole spatial (lane) axis.
    o_ref[...] = jnp.max(x_ref[...], axis=-1, keepdims=True)


def _mac_kernel_tiled(x_ref, o_ref, *, hw, hw_tile, neg):
    # Grid = (row tiles, hw tiles); hw (reduction) axis is last and the output
    # block index is constant across it, so o_ref is the resident accumulator.
    k = pl.program_id(1)

    @pl.when(k == 0)
    def _init():
        o_ref[...] = jnp.full(o_ref.shape, neg, dtype=o_ref.dtype)

    x = x_ref[...]
    # Mask lanes past the true spatial extent (ragged last hw tile): the
    # OOB-padded part of the block holds arbitrary data and must not win the max.
    lane = lax.broadcasted_iota(jnp.int32, x.shape, dimension=1)
    valid = (k * hw_tile + lane) < hw
    x = jnp.where(valid, x, neg)
    o_ref[...] = jnp.maximum(o_ref[...], jnp.max(x, axis=-1, keepdims=True))


def _choose_tiles(rows, hw, itemsize, target_bytes):
    """Return (row_tile, hw_tile); hw_tile is None if one block spans all of hw."""
    sublane = {4: 8, 2: 16, 1: 32}.get(itemsize, 8)
    hw_pad = _round_up(hw, 128)  # VMEM lane-padding footprint

    # Path A: full spatial extent in one block (no reduction grid axis).
    if hw_pad * itemsize * sublane <= target_bytes:
        row_tile = (target_bytes // (hw_pad * itemsize)) // sublane * sublane
        row_tile = max(sublane, row_tile)
        if row_tile >= rows:
            row_tile = rows  # single row block; full-dim block is always legal
        return row_tile, None

    # Path B: also tile hw (very large images); keep rows reasonably wide.
    row_tile = min(256, _round_up(rows, sublane))
    if row_tile >= rows:
        row_tile = rows
    hw_tile = (target_bytes // (max(row_tile, sublane) * itemsize)) // 128 * 128
    hw_tile = max(128, hw_tile)
    hw_tile = min(hw_tile, _round_up(hw, 128))
    return row_tile, hw_tile


def mac_forward(x, *, use_pallas=None, block_bytes=4 * 1024 * 1024,
                _force_hw_tile=None):
    """Global max pooling, equivalent to F.max_pool2d(x, (H, W)).

    x: (N, C, H, W) array. Returns (N, C, 1, 1).
    """
    N, C, H, W = x.shape
    rows = N * C
    hw = H * W
    itemsize = jnp.dtype(x.dtype).itemsize

    if use_pallas is None:
        # Below a few hundred KiB the pallas_call launch is pure overhead.
        use_pallas = rows * hw * itemsize >= 256 * 1024
    if not use_pallas or not jnp.issubdtype(x.dtype, jnp.floating):
        return jnp.max(x, axis=(2, 3), keepdims=True)

    x2d = x.reshape(rows, hw)
    row_tile, hw_tile = _choose_tiles(rows, hw, itemsize, block_bytes)
    if _force_hw_tile is not None:
        hw_tile = _force_hw_tile

    out_shape = jax.ShapeDtypeStruct((rows, 1), x.dtype)
    cost = pl.CostEstimate(
        flops=rows * hw,
        transcendentals=0,
        bytes_accessed=rows * hw * itemsize + rows * itemsize,
    )

    if hw_tile is None:
        grid = (pl.cdiv(rows, row_tile),)
        out2d = pl.pallas_call(
            _mac_kernel_full,
            out_shape=out_shape,
            grid=grid,
            in_specs=[pl.BlockSpec((row_tile, hw), lambda i: (i, 0))],
            out_specs=pl.BlockSpec((row_tile, 1), lambda i: (i, 0)),
            compiler_params=pltpu.CompilerParams(
                dimension_semantics=("parallel",),
                vmem_limit_bytes=32 * 1024 * 1024,
            ),
            cost_estimate=cost,
        )(x2d)
    else:
        grid = (pl.cdiv(rows, row_tile), pl.cdiv(hw, hw_tile))
        kernel = functools.partial(
            _mac_kernel_tiled, hw=hw, hw_tile=hw_tile, neg=float("-inf"))
        out2d = pl.pallas_call(
            kernel,
            out_shape=out_shape,
            grid=grid,
            in_specs=[pl.BlockSpec((row_tile, hw_tile), lambda i, k: (i, k))],
            out_specs=pl.BlockSpec((row_tile, 1), lambda i, k: (i, 0)),
            compiler_params=pltpu.CompilerParams(
                dimension_semantics=("parallel", "arbitrary"),
                vmem_limit_bytes=32 * 1024 * 1024,
            ),
            cost_estimate=cost,
        )(x2d)

    return out2d.reshape(N, C, 1, 1)


if __name__ == "__main__":
    key = jax.random.PRNGKey(0)

    # Small test shape consistent with the module; force the Pallas path
    # (it is below the tiny-input short-circuit threshold).
    N, C, H, W = 2, 4, 16, 16
    x = jax.random.normal(key, (N, C, H, W), dtype=jnp.float32)
    y = mac_forward(x, use_pallas=True)
    jax.block_until_ready(y)
    y_ref = jnp.max(x, axis=(2, 3), keepdims=True)
    assert y.shape == (N, C, 1, 1), y.shape
    assert jnp.allclose(y, y_ref), "full-hw path mismatch vs reference"

    # Also exercise the hw-tiled reduction path (including ragged-last-tile
    # masking) at a small shape by forcing a small hw tile.
    N2, C2, H2, W2 = 2, 4, 16, 24  # hw = 384; hw_tile = 256 -> ragged last tile
    x2 = jax.random.normal(jax.random.PRNGKey(0), (N2, C2, H2, W2),
                           dtype=jnp.float32)
    y2 = mac_forward(x2, use_pallas=True, _force_hw_tile=256)
    jax.block_until_ready(y2)
    y2_ref = jnp.max(x2, axis=(2, 3), keepdims=True)
    assert y2.shape == (N2, C2, 1, 1), y2.shape
    assert jnp.allclose(y2, y2_ref), "hw-tiled path mismatch vs reference"

    print("KERNEL_OK")
</pallas_src>

<mosaic_0001>
module attributes {stable_mosaic.version = 11 : i64} {
  func.func @_mac_kernel_full(%arg0: i32, %arg1: memref<8x256xf32, #tpu.memory_space<vmem>>, %arg2: memref<8x1xf32, #tpu.memory_space<vmem>>) attributes {dimension_semantics = [#tpu.dimension_semantics<parallel>], iteration_bounds = array<i64: 1>, scalar_prefetch = 0 : i64, scratch_operands = 0 : i64, tpu.core_type = #tpu.core_type<tc>, window_params = [{transform_indices = @transform_0, window_bounds = array<i64: 8, 256>}, {transform_indices = @transform_1, window_bounds = array<i64: 8, 1>}]} {
    %c0 = arith.constant 0 : index
    %c0_0 = arith.constant 0 : index
    %0 = vector.load %arg1[%c0, %c0_0] : memref<8x256xf32, #tpu.memory_space<vmem>>, vector<8x256xf32>
    %cst = arith.constant dense<0xFF800000> : vector<8xf32>
    %1 = vector.multi_reduction <maximumf>, %0, %cst [1] : vector<8x256xf32> to vector<8xf32>
    %2 = vector.shape_cast %1 : vector<8xf32> to vector<8x1xf32>
    %c0_1 = arith.constant 0 : index
    %c0_2 = arith.constant 0 : index
    %3 = vector.load %arg2[%c0_1, %c0_2] : memref<8x1xf32, #tpu.memory_space<vmem>>, vector<8x1xf32>
    tpu.vector_store %arg2[%c0_1, %c0_2], %2 {strides = array<i32>} : memref<8x1xf32, #tpu.memory_space<vmem>>, vector<8x1xf32>,
    return
  }
  func.func @transform_0(%arg0: i32) -> (i32, i32) {
    %c0_i32 = arith.constant 0 : i32
    %c0_i32_0 = arith.constant 0 : i32
    return %arg0, %c0_i32 : i32, i32
  }
  func.func @transform_1(%arg0: i32) -> (i32, i32) {
    %c0_i32 = arith.constant 0 : i32
    %c0_i32_0 = arith.constant 0 : i32
    return %arg0, %c0_i32 : i32, i32
  }
}

</mosaic_0001>

<llo_original>
// kernel: tpu_custom_call.1
$region0: #{tpu_custom_call.1}
  #allocation0 [shape = 'u32[]', space=smem, size = 0x4, offset = 0x4, fixed_abs, tag = 'smem constant byte address 0x4 - core index']
  #allocation1 [shape = 'u32[144,128]{1,0:T(1,128)}', space=vmem, size = 0x12000, scoped, tag = 'internal scratch']
  %s0 = inlined_call_operand.hbm [shape: f32[8,256], index: 0, kind: input, shape index: {}]
  %s1 = inlined_call_operand.vmem [shape: f32[8,1], index: 1, kind: output, shape index: {}]
  %s2 = sld [smem:[#allocation0]]
  $region18: #{tpu_custom_call.1} parent=0
    _
  %s4 = ssub.s32 1, %s2
  %s5 = scalar_select 0, %s4, %s2
  $region1: #{tpu_custom_call.1} parent=0
    #allocation2 [shape = 'u8[8192]{0}', space=vmem, size = 0x2000, scoped, tag = 'input window, operand 0, single buffered']
    #allocation3 [shape = 's32[1]{0}', space=sflag, size = 0x4, scoped, tag = 'scoped memory for tpu_custom_call.1']
    %6 = vsyncpa [#allocation3], 0
    // Predicated region
    $region2: #{tpu_custom_call.1} parent=1 // pred_check
      _
    $region3: #{tpu_custom_call.1} parent=1 // pred_check_branch
      %8 = sbr.rel (0) target = $region5
    $region4: #{tpu_custom_call.1} parent=1 // pred_region
      %s10 = ssub.s32 256, 256
      %11 = vsyncadd [#allocation3], %s10
      %s13 = sshll.u32 [#allocation2], 4
      %s14 = int_to_ptr.vmem [resolvable:$true] %s13
      %16 = dma.hbm_to_vmem [thread:$0]  %s0, 256, %s14, [#allocation3]
    $region5: #{tpu_custom_call.1} parent=1 // pred_fallthru
      _
    // Predicated region
    $region6: #{tpu_custom_call.1} parent=1 // pred_check
      _
    $region7: #{tpu_custom_call.1} parent=1 // pred_check_branch
      %18 = sbr.rel (0) target = $region9
    $region8: #{tpu_custom_call.1} parent=1 // pred_region
      %19 = dma.done [#allocation3], 256
    $region9: #{tpu_custom_call.1} parent=1 // pred_fallthru
      _
    %v20 = vld [vmem:[#allocation2] sm:$0xff]
    %v21 = vld [vmem:[#allocation2 + $0x8] sm:$0xff]
    %v22 = vmax.f32 %v20, %v21
    %23 = vmax.xlane.f32.xlu0 %v22
    %v24 = vpop.xlane.xlu0 %23
    %vm25 = vcmask 7168
    %26 = vst.msk [vmem:[%s1] sm:$0xff] %vm25, %v24
    // Predicated region
    $region10: #{tpu_custom_call.1} parent=1 // pred_check
      _
    $region11: #{tpu_custom_call.1} parent=1 // pred_check_branch
      %28 = sbr.rel (0) target = $region13
    $region12: #{tpu_custom_call.1} parent=1 // pred_region
      _
    $region13: #{tpu_custom_call.1} parent=1 // pred_fallthru
      _
    // Predicated region
    $region14: #{tpu_custom_call.1} parent=1 // pred_check
      _
    $region15: #{tpu_custom_call.1} parent=1 // pred_check_branch
      %30 = sbr.rel (0) target = $region17
    $region16: #{tpu_custom_call.1} parent=1 // pred_region
      _
    $region17: #{tpu_custom_call.1} parent=1 // pred_fallthru
      _
    %31 = vsyncpa [#allocation3], 1

</llo_original>
